<compile_context>
chip_gen: v7x
topology: tpu7x:2x2x1
jax: 0.10.0
libtpu: 0.0.40
codegen_flags: <defaults>
</compile_context>

<pallas_src>
import functools

import jax
import jax.numpy as jnp
from jax.experimental import pallas as pl
from jax.experimental.pallas import tpu as pltpu


_LANES = 128
_MIN_BLOCKS = 4  # target >=4 grid steps on big inputs (v7x: 2 TCs x double-buffer)


def _rmsnorm_kernel(x_ref, w_ref, o_ref, *, eps, seg, groups):
    """One row-tile of RMSNorm.

    x_ref: (tile_rows, hidden_eff) input block. The partial last block may
           contain undefined rows; that is safe (independent rows + masked
           out-of-range stores).
    w_ref: (1, hidden_eff) f32 weight, resident across all grid steps.
    o_ref: (tile_rows, hidden_eff) output block in the input dtype.
    """
    x = x_ref[...].astype(jnp.float32)
    w = w_ref[...]                                   # f32, broadcasts over rows
    if groups == 1:
        # hidden spans the lane axis directly: plain XLU reduce over lanes.
        ms = jnp.mean(x * x, axis=-1, keepdims=True)
        inv_rms = jax.lax.rsqrt(ms + eps)            # EUP rsqrt
    else:
        # Lane-dense packed layout: each 128-lane row holds `groups` logical
        # rows of `seg` elements. Segmented sum-of-squares via one small MXU
        # matmul against a block-diagonal ones matrix; the result is already
        # broadcast across each segment's lanes.
        ph = x.shape[-1]
        i = jax.lax.broadcasted_iota(jnp.int32, (ph, ph), 0) // seg
        j = jax.lax.broadcasted_iota(jnp.int32, (ph, ph), 1) // seg
        block_diag = (i == j).astype(jnp.float32)
        seg_ss = jnp.dot(x * x, block_diag, preferred_element_type=jnp.float32)
        inv_rms = jax.lax.rsqrt(seg_ss * (1.0 / seg) + eps)
    o_ref[...] = (w * (x * inv_rms)).astype(o_ref.dtype)


def _vmem_sizing():
    """Generation-aware VMEM sizing (block budget, compiler vmem limit).

    v5e/v6e (128 MiB per core)  -> limit ~96 MiB, block budget ~57 MiB.
    v7x     (64 MiB per TC)     -> limit  48 MiB, block budget ~28 MiB.
    Fallback (query unavailable) -> the v7x-safe numbers.
    """
    default_cap = 64 * 1024 * 1024
    try:
        cap = int(getattr(pltpu.get_tpu_info(), "vmem_capacity_bytes", default_cap))
    except Exception:  # pragma: no cover - not on a TPU / info unavailable
        cap = default_cap
    limit = max(32 * 1024 * 1024, min(int(cap * 0.75), cap - 8 * 1024 * 1024))
    budget = int(limit * 0.6)
    return budget, limit


def _choose_tile_rows(rows: int, hidden: int, itemsize: int, budget: int) -> int:
    """Largest row tile whose double-buffered in/out blocks plus live f32
    temporaries fit the VMEM block budget."""
    # 2 pipeline buffers x (input + output) blocks in the input dtype, plus
    # ~2 live f32 temporaries (x in f32 and the scaled product) per element.
    per_row_bytes = hidden * (4 * itemsize + 2 * 4)
    max_tile = max(8, budget // max(per_row_bytes, 1))
    if rows <= max_tile:
        # Full-extent block: always a legal block shape.
        return rows
    # Multiple of 32 rows satisfies the sublane tile for every dtype
    # (f32: 8, bf16: 16, int8/fp8: 32).
    return max(32, (max_tile // 32) * 32)


def rmsnorm(hidden_states: jax.Array, weight: jax.Array, eps: float = 1e-12,
            tile_rows: int | None = None) -> jax.Array:
    """RMSNorm over the last axis of `hidden_states`, scaled by `weight`."""
    orig_shape = hidden_states.shape
    hidden = orig_shape[-1]
    assert weight.shape == (hidden,)

    x2d = hidden_states.reshape(-1, hidden)
    rows = x2d.shape[0]
    itemsize = x2d.dtype.itemsize

    # Lane-dense packing for narrow hidden (< 128 lanes): pack G = 128/hidden
    # logical rows per 128-lane vector row so stores are unmasked full-lane vst.
    groups = 1
    if hidden < _LANES and _LANES % hidden == 0 and rows % (_LANES // hidden) == 0:
        groups = _LANES // hidden
    rows_eff = rows // groups
    hidden_eff = hidden * groups

    x_eff = x2d.reshape(rows_eff, hidden_eff)
    w_f32 = weight.astype(jnp.float32)
    w_eff = (jnp.tile(w_f32, groups) if groups > 1 else w_f32).reshape(1, hidden_eff)

    budget, vmem_limit = _vmem_sizing()

    if tile_rows is None:
        tile_rows = _choose_tile_rows(rows_eff, hidden_eff, itemsize, budget)
        # Guarantee a multi-block grid on big inputs so the 'parallel' row axis
        # shards across both v7x TensorCores and inter-step pipelining has work.
        if rows_eff >= _MIN_BLOCKS * 32:
            cap_rows = max(32, (pl.cdiv(rows_eff, _MIN_BLOCKS) // 32) * 32)
            tile_rows = min(tile_rows, cap_rows)
    else:
        # Validate a user-supplied tile against the dtype's sublane tiling.
        sublane = {4: 8, 2: 16, 1: 32}.get(itemsize, 8)
        if tile_rows < rows_eff:
            tile_rows = max(sublane, (tile_rows // sublane) * sublane)
    tile_rows = min(tile_rows, rows_eff)

    num_blocks = pl.cdiv(rows_eff, tile_rows)

    cost = pl.CostEstimate(
        flops=4 * rows * hidden
        + (2 * rows_eff * hidden_eff * hidden_eff if groups > 1 else 0),
        transcendentals=rows,                       # one rsqrt per logical row
        bytes_accessed=2 * rows * hidden * itemsize + hidden_eff * 4,
    )

    out = pl.pallas_call(
        functools.partial(_rmsnorm_kernel, eps=eps, seg=hidden, groups=groups),
        out_shape=jax.ShapeDtypeStruct((rows_eff, hidden_eff), hidden_states.dtype),
        grid_spec=pltpu.PrefetchScalarGridSpec(
            num_scalar_prefetch=0,
            grid=(num_blocks,),
            in_specs=[
                pl.BlockSpec((tile_rows, hidden_eff), lambda i: (i, 0)),
                pl.BlockSpec((1, hidden_eff), lambda i: (0, 0)),  # weight stays resident
            ],
            out_specs=pl.BlockSpec((tile_rows, hidden_eff), lambda i: (i, 0)),
        ),
        compiler_params=pltpu.CompilerParams(
            dimension_semantics=("parallel",),
            vmem_limit_bytes=vmem_limit,
        ),
        cost_estimate=cost,
    )(x_eff, w_eff)

    return out.reshape(orig_shape)


def rmsnorm_reference(hidden_states, weight, eps=1e-12):
    x = hidden_states.astype(jnp.float32)
    variance = jnp.mean(x * x, axis=-1, keepdims=True)
    y = x * jax.lax.rsqrt(variance + eps)
    return (weight.astype(jnp.float32) * y).astype(hidden_states.dtype)


if __name__ == "__main__":
    key = jax.random.PRNGKey(0)
    k1, k2, k3 = jax.random.split(key, 3)

    # 1) Lane-aligned production-like path (hidden multiple of 128), auto tiling.
    batch, seq, hidden = 2, 8, 256
    x = jax.random.normal(k1, (batch, seq, hidden), dtype=jnp.float32)
    weight = jnp.ones((hidden,), dtype=jnp.float32)       # module initializes weight to ones
    out = jax.block_until_ready(rmsnorm(x, weight, eps=1e-12))
    ref = rmsnorm_reference(x, weight, eps=1e-12)
    assert out.shape == x.shape
    assert jnp.allclose(out, ref, atol=1e-5, rtol=1e-5), "mismatch vs reference (f32, aligned)"

    # 2) Ragged row count + forced small tile: exercises the partial last block
    #    (18 rows, 16-row bf16 blocks, grid = cdiv = 2, no wrapper-side pad).
    x2 = jax.random.normal(k2, (3, 6, hidden), dtype=jnp.bfloat16)
    w2 = (1.0 + 0.1 * jax.random.normal(k3, (hidden,), dtype=jnp.float32)).astype(jnp.bfloat16)
    out2 = jax.block_until_ready(rmsnorm(x2, w2, eps=1e-12, tile_rows=16))
    ref2 = rmsnorm_reference(x2, w2, eps=1e-12)
    assert out2.shape == x2.shape
    assert jnp.allclose(out2.astype(jnp.float32), ref2.astype(jnp.float32),
                        atol=3e-2, rtol=3e-2), "mismatch vs reference (bf16, ragged)"

    # 3) Narrow-hidden case (hidden = 32 < 128): exercises the lane-dense packed
    #    path (4 logical rows per 128-lane row, segmented MXU reduction).
    x3 = jax.random.normal(k1, (2, 8, 32), dtype=jnp.float32)
    w3 = jnp.ones((32,), dtype=jnp.float32)
    out3 = jax.block_until_ready(rmsnorm(x3, w3, eps=1e-12))
    ref3 = rmsnorm_reference(x3, w3, eps=1e-12)
    assert jnp.allclose(out3, ref3, atol=1e-5, rtol=1e-5), "mismatch vs reference (narrow hidden)"

    print("KERNEL_OK")
</pallas_src>

<mosaic_0001>
module attributes {stable_mosaic.version = 11 : i64} {
  func.func @_rmsnorm_kernel(%arg0: i32, %arg1: memref<16x256xf32, #tpu.memory_space<vmem>>, %arg2: memref<1x256xf32, #tpu.memory_space<vmem>>, %arg3: memref<16x256xf32, #tpu.memory_space<vmem>>) attributes {dimension_semantics = [#tpu.dimension_semantics<parallel>], iteration_bounds = array<i64: 1>, scalar_prefetch = 0 : i64, scratch_operands = 0 : i64, tpu.core_type = #tpu.core_type<tc>, window_params = [{transform_indices = @transform_0, window_bounds = array<i64: 16, 256>}, {pipeline_mode = #tpu.pipeline_mode<synchronous>, transform_indices = @transform_1, window_bounds = array<i64: 1, 256>}, {transform_indices = @transform_2, window_bounds = array<i64: 16, 256>}]} {
    %c0 = arith.constant 0 : index
    %c0_0 = arith.constant 0 : index
    %0 = vector.load %arg1[%c0, %c0_0] : memref<16x256xf32, #tpu.memory_space<vmem>>, vector<16x256xf32>
    %c0_1 = arith.constant 0 : index
    %c0_2 = arith.constant 0 : index
    %1 = vector.load %arg2[%c0_1, %c0_2] : memref<1x256xf32, #tpu.memory_space<vmem>>, vector<1x256xf32>
    %2 = arith.mulf %0, %0 : vector<16x256xf32>
    %cst = arith.constant dense<0.000000e+00> : vector<16xf32>
    %3 = vector.multi_reduction <add>, %2, %cst [1] : vector<16x256xf32> to vector<16xf32>
    %4 = vector.shape_cast %3 : vector<16xf32> to vector<16x1xf32>
    %cst_3 = arith.constant 2.560000e+02 : f32
    %5 = vector.broadcast %cst_3 : f32 to vector<16x1xf32>
    %6 = arith.divf %4, %5 : vector<16x1xf32>
    %cst_4 = arith.constant 9.99999996E-13 : f32
    %7 = vector.broadcast %cst_4 : f32 to vector<16x1xf32>
    %8 = arith.addf %6, %7 : vector<16x1xf32>
    %9 = math.rsqrt %8 : vector<16x1xf32>
    %10 = vector.broadcast %9 : vector<16x1xf32> to vector<16x256xf32>
    %11 = arith.mulf %0, %10 : vector<16x256xf32>
    %12 = vector.broadcast %1 : vector<1x256xf32> to vector<16x256xf32>
    %13 = arith.mulf %12, %11 : vector<16x256xf32>
    %c0_5 = arith.constant 0 : index
    %c0_6 = arith.constant 0 : index
    %14 = vector.load %arg3[%c0_5, %c0_6] : memref<16x256xf32, #tpu.memory_space<vmem>>, vector<16x256xf32>
    tpu.vector_store %arg3[%c0_5, %c0_6], %13 {strides = array<i32>} : memref<16x256xf32, #tpu.memory_space<vmem>>, vector<16x256xf32>,
    return
  }
  func.func @transform_0(%arg0: i32) -> (i32, i32) {
    %c0_i32 = arith.constant 0 : i32
    %c0_i32_0 = arith.constant 0 : i32
    return %arg0, %c0_i32 : i32, i32
  }
  func.func @transform_1(%arg0: i32) -> (i32, i32) {
    %c0_i32 = arith.constant 0 : i32
    %c0_i32_0 = arith.constant 0 : i32
    %c0_i32_1 = arith.constant 0 : i32
    return %c0_i32, %c0_i32_0 : i32, i32
  }
  func.func @transform_2(%arg0: i32) -> (i32, i32) {
    %c0_i32 = arith.constant 0 : i32
    %c0_i32_0 = arith.constant 0 : i32
    return %arg0, %c0_i32 : i32, i32
  }
}

</mosaic_0001>

<llo_original>
// kernel: tpu_custom_call.1
$region0: #{tpu_custom_call.1}
  #allocation0 [shape = 'u32[]', space=smem, size = 0x4, offset = 0x4, fixed_abs, tag = 'smem constant byte address 0x4 - core index']
  #allocation1 [shape = 'u32[144,128]{1,0:T(1,128)}', space=vmem, size = 0x12000, scoped, tag = 'internal scratch']
  %s0 = inlined_call_operand.hbm [shape: f32[16,256], index: 0, kind: input, shape index: {}]
  %s1 = inlined_call_operand.vmem [shape: f32[1,256], index: 1, kind: input, shape index: {}]
  %s2 = inlined_call_operand.hbm [shape: f32[16,256], index: 2, kind: output, shape index: {}]
  %s3 = sld [smem:[#allocation0]]
  $region22: #{tpu_custom_call.1} parent=0
    _
  %s5 = ssub.s32 1, %s3
  %s6 = scalar_select 0, %s5, %s3
  $region1: #{tpu_custom_call.1} parent=0
    #allocation2 [shape = 'u8[16384]{0}', space=vmem, size = 0x4000, scoped, tag = 'input window, operand 0, single buffered']
    #allocation3 [shape = 's32[1]{0}', space=sflag, size = 0x4, scoped, tag = 'scoped memory for tpu_custom_call.1']
    #allocation4 [shape = 's32[1]{0}', space=sflag, size = 0x4, scoped, tag = 'scoped memory for tpu_custom_call.1']
    #allocation5 [shape = 'u8[16384]{0}', space=vmem, size = 0x4000, scoped, tag = 'output window, operand 0, single buffered']
    %7 = vsyncpa [#allocation3], 0
    %8 = vsyncpa [#allocation4], 0
    // Predicated region
    $region2: #{tpu_custom_call.1} parent=1 // pred_check
      _
    $region3: #{tpu_custom_call.1} parent=1 // pred_check_branch
      %10 = sbr.rel (0) target = $region5
    $region4: #{tpu_custom_call.1} parent=1 // pred_region
      %s12 = ssub.s32 512, 512
      %13 = vsyncadd [#allocation3], %s12
      %s14 = sshll.u32 [#allocation2], 4
      %s15 = int_to_ptr.vmem [resolvable:$true] %s14
      %20 = dma.hbm_to_vmem [thread:$0]  %s0, 512, %s15, [#allocation3], 256, 256, 16
    $region5: #{tpu_custom_call.1} parent=1 // pred_fallthru
      _
    // Predicated region
    $region6: #{tpu_custom_call.1} parent=1 // pred_check
      _
    $region7: #{tpu_custom_call.1} parent=1 // pred_check_branch
      %22 = sbr.rel (0) target = $region9
    $region8: #{tpu_custom_call.1} parent=1 // pred_region
      _
    $region9: #{tpu_custom_call.1} parent=1 // pred_fallthru
      _
    // Predicated region
    $region10: #{tpu_custom_call.1} parent=1 // pred_check
      _
    $region11: #{tpu_custom_call.1} parent=1 // pred_check_branch
      %24 = sbr.rel (0) target = $region13
    $region12: #{tpu_custom_call.1} parent=1 // pred_region
      %25 = dma.done [#allocation3], 512
    $region13: #{tpu_custom_call.1} parent=1 // pred_fallthru
      _
    %v26 = vld [vmem:[#allocation2] sm:$0xff]
    %v27 = vld [vmem:[#allocation2 + $0x8] sm:$0xff]
    %v28 = vld [vmem:[#allocation2 + $0x10] sm:$0xff]
    %v29 = vld [vmem:[#allocation2 + $0x18] sm:$0xff]
    %v30 = vld [vmem:[%s1] sm:$0x3]
    %v31 = vmul.f32 %v26, %v26
    %v32 = vmul.f32 %v27, %v27
    %v33 = vmul.f32 %v28, %v28
    %v34 = vmul.f32 %v29, %v29
    %v35 = vadd.f32 %v31, %v32
    %36 = vadd.xlane.f32.xlu0 %v35
    %v37 = vpop.xlane.xlu0 %36
    %v38 = vadd.f32 %v33, %v34
    %39 = vadd.xlane.f32.xlu0 %v38
    %v40 = vpop.xlane.xlu0 %39
    %v41 = vrcp.pop 256.0
    %v42 = vmul.f32 %v37, %v41
    %v43 = vmul.f32 %v40, %v41
    %v44 = vadd.f32 %v42, 1e-12
    %v45 = vadd.f32 %v43, 1e-12
    %v46 = vrsqrt.pop %v44
    %v47 = vrsqrt.pop %v45
    %v48 = vmul.f32 %v26, %v46
    %v49 = vmul.f32 %v27, %v46
    %v50 = vmul.f32 %v28, %v47
    %v51 = vmul.f32 %v29, %v47
    %v53 = vlaneseq
    %v54 = vshrl.u32 %v53, 7
    %v55 = vsub.s32 0, %v54
    %v56 = vrot.slane %v30, %v55
    %v57 = vlaneseq
    %v58 = vshrl.u32 %v57, 7
    %v59 = vsub.s32 1, %v58
    %v60 = vrot.slane %v30, %v59
    %v63 = vmul.f32 %v56, %v48
    %v64 = vmul.f32 %v60, %v49
    %v65 = vmul.f32 %v56, %v50
    %v66 = vmul.f32 %v60, %v51
    %67 = vst [vmem:[#allocation5] sm:$0xff] %v63
    %68 = vst [vmem:[#allocation5 + $0x8] sm:$0xff] %v64
    %69 = vst [vmem:[#allocation5 + $0x10] sm:$0xff] %v65
    %70 = vst [vmem:[#allocation5 + $0x18] sm:$0xff] %v66
    // Predicated region
    $region14: #{tpu_custom_call.1} parent=1 // pred_check
      _
    $region15: #{tpu_custom_call.1} parent=1 // pred_check_branch
      %72 = sbr.rel (0) target = $region17
    $region16: #{tpu_custom_call.1} parent=1 // pred_region
      %s74 = ssub.s32 512, 512
      %75 = vsyncadd [#allocation4], %s74
      %s76 = sshll.u32 [#allocation5], 4
      %s77 = int_to_ptr.vmem [resolvable:$true] %s76
      %82 = dma.vmem_to_hbm [thread:$0]  %s77, 512, %s2, [#allocation4], 256, 256, 16
    $region17: #{tpu_custom_call.1} parent=1 // pred_fallthru
      _
    // Predicated region
    $region18: #{tpu_custom_call.1} parent=1 // pred_check
      _
    $region19: #{tpu_custom_call.1} parent=1 // pred_check_branch
      %84 = sbr.rel (0) target = $region21
    $region20: #{tpu_custom_call.1} parent=1 // pred_region
      %85 = dma.done [#allocation4], 512
    $region21: #{tpu_custom_call.1} parent=1 // pred_fallthru
      _
    %86 = vsyncpa [#allocation3], 1
    %87 = vsyncpa [#allocation4], 1

</llo_original>
